<compile_context>
chip_gen: v7x
topology: tpu7x:2x2x1
jax: 0.10.0
libtpu: 0.0.40
codegen_flags: <defaults>
</compile_context>

<pallas_src>
import math
import functools

import jax
import jax.numpy as jnp
from jax import lax
from jax.experimental import pallas as pl
from jax.experimental.pallas import tpu as pltpu

NEG_INF = -1e30                     # finite "-inf": exp(x - m) underflows to exactly 0 in f32


def _vmem_limit_bytes():
    # Generation-aware VMEM budget: ~75% of physical capacity, capped at 100 MiB.
    # (v5e/v6e: 128 MiB -> ~96-100 MiB; v7x: 64 MiB -> 48 MiB.)
    try:
        cap = pltpu.get_tpu_info().vmem_capacity_bytes
        return min(int(cap * 0.75), 100 * 1024 * 1024)
    except Exception:
        return 48 * 1024 * 1024


VMEM_LIMIT = _vmem_limit_bytes()


# ----------------------------- in-kernel helpers -----------------------------

def _layernorm(x, g, b, eps=1e-5):
    mu = jnp.mean(x, axis=-1, keepdims=True)
    var = jnp.mean((x - mu) ** 2, axis=-1, keepdims=True)
    return (x - mu) * lax.rsqrt(var + eps) * g + b


def _gelu_tanh(x):
    # torch.nn.GELU(approximate='tanh')
    c = math.sqrt(2.0 / math.pi)
    return 0.5 * x * (1.0 + jnp.tanh(c * (x + 0.044715 * x * x * x)))


def _pick_tile(n, candidates):
    for c in candidates:
        if c <= n and n % c == 0:
            return c
    return n


# --------------------- kernel 1: LN1 + fused QKV projection (head-major outputs) ---------------------

def qkv_proj_kernel(x_ref, g_ref, b_ref, w_ref, bias_ref,
                    q_ref, k_ref, v_ref, *, scale, n_head, head_dim):
    d_model = n_head * head_dim
    y = _layernorm(x_ref[0], g_ref[...], b_ref[...])                       # (ts, D) f32
    yb = y.astype(jnp.bfloat16)
    # single wide-N MXU pass: (ts, D) x (D, 3D) -> (ts, 3D)
    qkv = jnp.dot(yb, w_ref[...], preferred_element_type=jnp.float32) + bias_ref[...]
    q = (qkv[:, :d_model] * scale).astype(jnp.bfloat16)                    # fold 1/sqrt(hd) into Q
    k = qkv[:, d_model:2 * d_model].astype(jnp.bfloat16)
    v = qkv[:, 2 * d_model:].astype(jnp.bfloat16)
    # write q/k/v directly in (B, H, S, hd) layout -> no wrapper-side split transposes
    for h in range(n_head):
        sl = slice(h * head_dim, (h + 1) * head_dim)
        q_ref[0, h] = q[:, sl]
        k_ref[0, h] = k[:, sl]
        v_ref[0, h] = v[:, sl]


# ------- kernel 2: flash-style causal attention + fused output projection + residual add -------

def flash_attn_kernel(x_ref, q_ref, k_ref, v_ref, wo_ref, bo_ref, o_ref,
                      m_sc, l_sc, acc_sc, *, tq, tk):
    qi = pl.program_id(1)
    ki = pl.program_id(2)
    q_start = qi * tq
    k_start = ki * tk

    @pl.when(ki == 0)
    def _init():
        m_sc[...] = jnp.full_like(m_sc, NEG_INF)
        l_sc[...] = jnp.zeros_like(l_sc)
        acc_sc[...] = jnp.zeros_like(acc_sc)

    def scores():
        # heads batched in one MXU contraction: (H, tq, hd) x (H, tk, hd) -> (H, tq, tk)
        return lax.dot_general(q_ref[0], k_ref[0], (((2,), (2,)), ((0,), (0,))),
                               preferred_element_type=jnp.float32)

    def online_update(s):
        m_prev = m_sc[...]
        m_new = jnp.maximum(m_prev, jnp.max(s, axis=-1, keepdims=True))    # (H, tq, 1)
        alpha = jnp.exp(m_prev - m_new)
        p = jnp.exp(s - m_new)
        l_sc[...] = alpha * l_sc[...] + jnp.sum(p, axis=-1, keepdims=True)
        acc_sc[...] = alpha * acc_sc[...] + lax.dot_general(
            p.astype(jnp.bfloat16), v_ref[0], (((2,), (1,)), ((0,), (0,))),
            preferred_element_type=jnp.float32)                            # (H, tq, hd)
        m_sc[...] = m_new

    # fully-visible blocks strictly below the diagonal: no mask construction at all
    @pl.when(k_start + tk <= q_start)
    def _below_diag():
        online_update(scores())

    # diagonal-straddling blocks: apply the causal mask
    @pl.when(jnp.logical_and(k_start + tk > q_start, k_start <= q_start + (tq - 1)))
    def _on_diag():
        s = scores()
        row = q_start + lax.broadcasted_iota(jnp.int32, (tq, tk), 0)
        col = k_start + lax.broadcasted_iota(jnp.int32, (tq, tk), 1)
        s = jnp.where((col <= row)[None, :, :], s, NEG_INF)
        online_update(s)

    # (blocks fully above the diagonal: neither branch runs; their K/V DMA is also skipped
    #  because the K/V index_map clamps to the causal boundary.)

    @pl.when(ki == pl.num_programs(2) - 1)
    def _finalize():
        inv = pl.reciprocal(l_sc[...], approx=True)                        # EUP, not VALU divide
        ctx = (acc_sc[...] * inv).astype(jnp.bfloat16)                     # (H, tq, hd)
        # fused output projection: per-head contraction with wo (H, hd, D), summed over heads
        attn = lax.dot_general(ctx, wo_ref[...], (((2,), (1,)), ((0,), (0,))),
                               preferred_element_type=jnp.float32)         # (H, tq, D)
        attn = jnp.sum(attn, axis=0) + bo_ref[...]                         # (tq, D)
        o_ref[0] = (x_ref[0] + attn).astype(o_ref.dtype)                   # residual add, (B,S,D) out


# --------------------- kernel 3: LN2 + tiled MLP + residual ---------------------

def mlp_kernel(x_ref, g_ref, b_ref, w1_ref, b1_ref, w2_ref, b2_ref,
               o_ref, y_sc, acc_sc):
    ni = pl.program_id(2)

    @pl.when(ni == 0)
    def _init():
        y_sc[...] = _layernorm(x_ref[0], g_ref[...], b_ref[...]).astype(jnp.bfloat16)
        acc_sc[...] = jnp.zeros_like(acc_sc)

    # one d_mlp tile per grid step (K-reduction over the hidden dim)
    hmid = jnp.dot(y_sc[...], w1_ref[...], preferred_element_type=jnp.float32) + b1_ref[...]
    hmid = _gelu_tanh(hmid)
    acc_sc[...] += jnp.dot(hmid.astype(jnp.bfloat16), w2_ref[...],
                           preferred_element_type=jnp.float32)

    @pl.when(ni == pl.num_programs(2) - 1)
    def _finalize():
        o_ref[0] = x_ref[0] + acc_sc[...] + b2_ref[...]


# ----------------------------- kernel 4: final LN + classifier -----------------------------

def head_kernel(x_ref, g_ref, b_ref, wp_ref, bp_ref, o_ref):
    y = _layernorm(x_ref[0], g_ref[...], b_ref[...])
    o_ref[0] = jnp.dot(y.astype(jnp.bfloat16), wp_ref[...],
                       preferred_element_type=jnp.float32) + bp_ref[...]


# ----------------------------- pallas_call wrappers -----------------------------

def run_qkv_proj(h, lp, n_head):
    B, S, D = h.shape
    hd = D // n_head
    ts = _pick_tile(S, (512, 256, 128))
    grid = (B, S // ts)
    xspec = pl.BlockSpec((1, ts, D), lambda b, s: (b, s, 0))
    qkvspec = pl.BlockSpec((1, n_head, ts, hd), lambda b, s: (b, 0, s, 0))

    def cspec(a):
        nd = a.ndim
        return pl.BlockSpec(a.shape, lambda b, s, _nd=nd: (0,) * _nd)

    scale = 1.0 / math.sqrt(hd)
    out_sd = jax.ShapeDtypeStruct((B, n_head, S, hd), jnp.bfloat16)
    cost = pl.CostEstimate(flops=6 * B * S * D * D,
                           transcendentals=B * S,
                           bytes_accessed=4 * B * S * D + 6 * B * S * D + 6 * D * D)
    return pl.pallas_call(
        functools.partial(qkv_proj_kernel, scale=scale, n_head=n_head, head_dim=hd),
        out_shape=(out_sd, out_sd, out_sd),
        grid=grid,
        in_specs=[xspec, cspec(lp['ln1_g']), cspec(lp['ln1_b']),
                  cspec(lp['wqkv_t']), cspec(lp['bqkv'])],
        out_specs=(qkvspec, qkvspec, qkvspec),
        compiler_params=pltpu.CompilerParams(
            dimension_semantics=("parallel", "parallel"),
            vmem_limit_bytes=VMEM_LIMIT),
        cost_estimate=cost,
    )(h, lp['ln1_g'], lp['ln1_b'], lp['wqkv_t'], lp['bqkv'])


def run_flash_attn_out(h, qh, kh, vh, lp):
    """Causal flash attention + output projection + residual; returns x + attn(LN1(x))."""
    B, H, S, hd = qh.shape
    D = H * hd
    tq = _pick_tile(S, (256, 128))
    tk = _pick_tile(S, (512, 256, 128))
    grid = (B, S // tq, S // tk)

    xspec = pl.BlockSpec((1, tq, D), lambda b, qi, ki: (b, qi, 0))
    qspec = pl.BlockSpec((1, H, tq, hd), lambda b, qi, ki: (b, 0, qi, 0))

    def kv_index(b, qi, ki):
        # clamp to the causal boundary: repeated block index => Pallas skips the DMA
        last_needed = (qi * tq + (tq - 1)) // tk
        return (b, 0, jnp.minimum(ki, last_needed), 0)

    kvspec = pl.BlockSpec((1, H, tk, hd), kv_index)
    wospec = pl.BlockSpec((H, hd, D), lambda b, qi, ki: (0, 0, 0))
    bospec = pl.BlockSpec((1, D), lambda b, qi, ki: (0, 0))
    ospec = pl.BlockSpec((1, tq, D), lambda b, qi, ki: (b, qi, 0))

    cost = pl.CostEstimate(flops=2 * B * H * S * S * hd + 2 * B * S * D * D,
                           transcendentals=(B * H * S * S) // 2,
                           bytes_accessed=6 * B * S * D + 8 * B * S * D + 2 * D * D)
    return pl.pallas_call(
        functools.partial(flash_attn_kernel, tq=tq, tk=tk),
        out_shape=jax.ShapeDtypeStruct((B, S, D), jnp.float32),
        grid=grid,
        in_specs=[xspec, qspec, kvspec, kvspec, wospec, bospec],
        out_specs=ospec,
        scratch_shapes=[pltpu.VMEM((H, tq, 1), jnp.float32),
                        pltpu.VMEM((H, tq, 1), jnp.float32),
                        pltpu.VMEM((H, tq, hd), jnp.float32)],
        compiler_params=pltpu.CompilerParams(
            dimension_semantics=("parallel", "parallel", "arbitrary"),
            vmem_limit_bytes=VMEM_LIMIT),
        cost_estimate=cost,
    )(h, qh, kh, vh, lp['wo_r'], lp['bo'])


def run_mlp(x1, lp):
    B, S, D = x1.shape
    d_mlp = lp['w1_t'].shape[1]
    ts = _pick_tile(S, (512, 256, 128))
    tn = _pick_tile(d_mlp, (1024, 512, 256, 128))
    grid = (B, S // ts, d_mlp // tn)

    xspec = pl.BlockSpec((1, ts, D), lambda b, s, n: (b, s, 0))
    ospec = pl.BlockSpec((1, ts, D), lambda b, s, n: (b, s, 0))

    def cspec(a):
        nd = a.ndim
        return pl.BlockSpec(a.shape, lambda b, s, n, _nd=nd: (0,) * _nd)

    w1spec = pl.BlockSpec((D, tn), lambda b, s, n: (0, n))
    b1spec = pl.BlockSpec((1, tn), lambda b, s, n: (0, n))
    w2spec = pl.BlockSpec((tn, D), lambda b, s, n: (n, 0))

    cost = pl.CostEstimate(flops=4 * B * S * D * d_mlp,
                           transcendentals=B * S * d_mlp,
                           bytes_accessed=8 * B * S * D + 4 * D * d_mlp)
    return pl.pallas_call(
        mlp_kernel,
        out_shape=jax.ShapeDtypeStruct((B, S, D), jnp.float32),
        grid=grid,
        in_specs=[xspec, cspec(lp['ln2_g']), cspec(lp['ln2_b']),
                  w1spec, b1spec, w2spec, cspec(lp['b2'])],
        out_specs=ospec,
        scratch_shapes=[pltpu.VMEM((ts, D), jnp.bfloat16),
                        pltpu.VMEM((ts, D), jnp.float32)],
        compiler_params=pltpu.CompilerParams(
            dimension_semantics=("parallel", "parallel", "arbitrary"),
            vmem_limit_bytes=VMEM_LIMIT),
        cost_estimate=cost,
    )(x1, lp['ln2_g'], lp['ln2_b'], lp['w1_t'], lp['b1'], lp['w2_t'], lp['b2'])


def run_head(h, params):
    B, S, D = h.shape
    C_pad = params['wp_t'].shape[1]
    ts = _pick_tile(S, (512, 256, 128))
    grid = (B, S // ts)
    xspec = pl.BlockSpec((1, ts, D), lambda b, s: (b, s, 0))
    ospec = pl.BlockSpec((1, ts, C_pad), lambda b, s: (b, s, 0))

    def cspec(a):
        nd = a.ndim
        return pl.BlockSpec(a.shape, lambda b, s, _nd=nd: (0,) * _nd)

    cost = pl.CostEstimate(flops=2 * B * S * D * C_pad,
                           transcendentals=B * S,
                           bytes_accessed=4 * B * S * D + 2 * D * C_pad + 4 * B * S * C_pad)
    return pl.pallas_call(
        head_kernel,
        out_shape=jax.ShapeDtypeStruct((B, S, C_pad), jnp.float32),
        grid=grid,
        in_specs=[xspec, cspec(params['lnf_g']), cspec(params['lnf_b']),
                  cspec(params['wp_t']), cspec(params['bp'])],
        out_specs=ospec,
        compiler_params=pltpu.CompilerParams(
            dimension_semantics=("parallel", "parallel"),
            vmem_limit_bytes=VMEM_LIMIT),
        cost_estimate=cost,
    )(h, params['lnf_g'], params['lnf_b'], params['wp_t'], params['bp'])


def run_encoder_layer(h, lp, n_head):
    q, k, v = run_qkv_proj(h, lp, n_head)            # (B, H, S, hd) bf16, head-major
    h = run_flash_attn_out(h, q, k, v, lp)           # (B, S, D) f32 = x + attn(LN1(x))
    h = run_mlp(h, lp)                               # (B, S, D) f32 = x1 + mlp(LN2(x1))
    return h


# ----------------------------- model glue (plain JAX) -----------------------------

def positional_encodings(d_model, seq_len):
    position = jnp.arange(seq_len, dtype=jnp.float32)[:, None]
    div_term = jnp.exp(jnp.arange(0, d_model, 2, dtype=jnp.float32)
                       * (-math.log(10000.0) / d_model))
    pe = jnp.zeros((seq_len, 1, d_model), jnp.float32)
    pe = pe.at[:, 0, 0::2].set(jnp.sin(position * div_term))
    pe = pe.at[:, 0, 1::2].set(jnp.cos(position * div_term))
    return pe


def init_params(key, n_layers, n_head, d_model, d_mlp, seq_len, n_class):
    assert d_model % n_head == 0
    hd = d_model // n_head
    ks = jax.random.split(key, n_layers + 2)
    params = {
        'emb': jax.random.normal(ks[0], (n_class, d_model), jnp.float32) * 0.02,
        'pe': positional_encodings(d_model, seq_len),
        'n_class': n_class,
    }
    layers = []
    for l in range(n_layers):
        k = jax.random.split(ks[2 + l], 4)
        # PyTorch MultiheadAttention in_proj_weight is (3D, D); rows [0:D]=Q, [D:2D]=K, [2D:3D]=V.
        in_proj = jax.random.normal(k[0], (3 * d_model, d_model), jnp.float32) * 0.02
        wo = jax.random.normal(k[1], (d_model, d_model), jnp.float32) * 0.02   # out_proj.weight
        layers.append(dict(
            ln1_g=jnp.ones((1, d_model), jnp.float32),
            ln1_b=jnp.zeros((1, d_model), jnp.float32),
            # fused QKV: qkv = x @ in_proj.T  (columns [0:D]=Q, [D:2D]=K, [2D:3D]=V)
            wqkv_t=in_proj.T.astype(jnp.bfloat16),
            bqkv=jnp.zeros((1, 3 * d_model), jnp.float32),
            # out-proj reshaped head-major for the fused finalize contraction
            wo_r=wo.T.reshape(n_head, hd, d_model).astype(jnp.bfloat16),
            bo=jnp.zeros((1, d_model), jnp.float32),
            ln2_g=jnp.ones((1, d_model), jnp.float32),
            ln2_b=jnp.zeros((1, d_model), jnp.float32),
            w1_t=(jax.random.normal(k[2], (d_mlp, d_model), jnp.float32) * 0.02)
                 .T.astype(jnp.bfloat16),
            b1=jnp.zeros((1, d_mlp), jnp.float32),
            w2_t=(jax.random.normal(k[3], (d_model, d_mlp), jnp.float32) * 0.02)
                 .T.astype(jnp.bfloat16),
            b2=jnp.zeros((1, d_model), jnp.float32),
        ))
    params['layers'] = layers

    # classifier, padded to a lane-dense multiple of 128 output columns
    c_pad = ((n_class + 127) // 128) * 128
    wp = jax.random.normal(ks[1], (n_class, d_model), jnp.float32) * 0.02
    wp_t = jnp.zeros((d_model, c_pad), jnp.float32).at[:, :n_class].set(wp.T)
    params['lnf_g'] = jnp.ones((1, d_model), jnp.float32)
    params['lnf_b'] = jnp.zeros((1, d_model), jnp.float32)
    params['wp_t'] = wp_t.astype(jnp.bfloat16)
    params['bp'] = jnp.zeros((1, c_pad), jnp.float32)
    return params


def transformer_forward(tokens, params, *, n_head, n_layers):
    # tokens: (S, B) int32 (PyTorch seq-first convention).
    S, B = tokens.shape
    emb = jnp.take(params['emb'], tokens, axis=0)              # (S, B, D) embedding gather (glue)
    h = emb + params['pe'][:S]                                 # + positional encodings
    h = jnp.transpose(h, (1, 0, 2))                            # -> kernel layout (B, S, D)
    for l in range(n_layers):
        h = run_encoder_layer(h, params['layers'][l], n_head)
    logits = run_head(h, params)                               # (B, S, C_pad)
    logits = logits[:, :, :params['n_class']]                  # drop lane padding
    return jnp.transpose(logits, (1, 0, 2))                    # back to (S, B, n_class)


if __name__ == "__main__":
    n_layers, n_head, d_model, d_mlp = 2, 4, 32, 64
    seq_len, n_class, batch = 8, 16, 2

    key = jax.random.PRNGKey(0)
    pkey, tkey = jax.random.split(key)
    params = init_params(pkey, n_layers, n_head, d_model, d_mlp, seq_len, n_class)
    tokens = jax.random.randint(tkey, (seq_len, batch), 0, n_class, dtype=jnp.int32)

    out = transformer_forward(tokens, params, n_head=n_head, n_layers=n_layers)
    out = jax.block_until_ready(out)
    assert out.shape == (seq_len, batch, n_class), out.shape
    assert bool(jnp.all(jnp.isfinite(out)))
    print("KERNEL_OK")
</pallas_src>

<mosaic_0001>
module attributes {stable_mosaic.version = 11 : i64} {
  func.func @qkv_proj_kernel(%arg0: i32, %arg1: i32, %arg2: memref<1x8x32xf32, #tpu.memory_space<vmem>>, %arg3: memref<1x32xf32, #tpu.memory_space<vmem>>, %arg4: memref<1x32xf32, #tpu.memory_space<vmem>>, %arg5: memref<32x96xbf16, #tpu.memory_space<vmem>>, %arg6: memref<1x96xf32, #tpu.memory_space<vmem>>, %arg7: memref<1x4x8x8xbf16, #tpu.memory_space<vmem>>, %arg8: memref<1x4x8x8xbf16, #tpu.memory_space<vmem>>, %arg9: memref<1x4x8x8xbf16, #tpu.memory_space<vmem>>) attributes {dimension_semantics = [#tpu.dimension_semantics<parallel>, #tpu.dimension_semantics<parallel>], iteration_bounds = array<i64: 2, 1>, scalar_prefetch = 0 : i64, scratch_operands = 0 : i64, tpu.core_type = #tpu.core_type<tc>, window_params = [{transform_indices = @transform_0, window_bounds = array<i64: 1, 8, 32>}, {pipeline_mode = #tpu.pipeline_mode<synchronous>, transform_indices = @transform_1, window_bounds = array<i64: 1, 32>}, {pipeline_mode = #tpu.pipeline_mode<synchronous>, transform_indices = @transform_2, window_bounds = array<i64: 1, 32>}, {pipeline_mode = #tpu.pipeline_mode<synchronous>, transform_indices = @transform_3, window_bounds = array<i64: 32, 96>}, {pipeline_mode = #tpu.pipeline_mode<synchronous>, transform_indices = @transform_4, window_bounds = array<i64: 1, 96>}, {transform_indices = @transform_5, window_bounds = array<i64: 1, 4, 8, 8>}, {transform_indices = @transform_6, window_bounds = array<i64: 1, 4, 8, 8>}, {transform_indices = @transform_7, window_bounds = array<i64: 1, 4, 8, 8>}]} {
    %c0 = arith.constant 0 : index
    %c0_0 = arith.constant 0 : index
    %c0_1 = arith.constant 0 : index
    %0 = vector.load %arg2[%c0, %c0_0, %c0_1] : memref<1x8x32xf32, #tpu.memory_space<vmem>>, vector<1x8x32xf32>
    %1 = vector.shape_cast %0 : vector<1x8x32xf32> to vector<8x32xf32>
    %c0_2 = arith.constant 0 : index
    %c0_3 = arith.constant 0 : index
    %2 = vector.load %arg3[%c0_2, %c0_3] : memref<1x32xf32, #tpu.memory_space<vmem>>, vector<1x32xf32>
    %c0_4 = arith.constant 0 : index
    %c0_5 = arith.constant 0 : index
    %3 = vector.load %arg4[%c0_4, %c0_5] : memref<1x32xf32, #tpu.memory_space<vmem>>, vector<1x32xf32>
    %cst = arith.constant dense<0.000000e+00> : vector<8xf32>
    %4 = vector.multi_reduction <add>, %1, %cst [1] : vector<8x32xf32> to vector<8xf32>
    %5 = vector.shape_cast %4 : vector<8xf32> to vector<8x1xf32>
    %cst_6 = arith.constant 3.200000e+01 : f32
    %6 = vector.broadcast %cst_6 : f32 to vector<8x1xf32>
    %7 = arith.divf %5, %6 : vector<8x1xf32>
    %8 = vector.broadcast %7 : vector<8x1xf32> to vector<8x32xf32>
    %9 = arith.subf %1, %8 : vector<8x32xf32>
    %10 = arith.mulf %9, %9 : vector<8x32xf32>
    %cst_7 = arith.constant dense<0.000000e+00> : vector<8xf32>
    %11 = vector.multi_reduction <add>, %10, %cst_7 [1] : vector<8x32xf32> to vector<8xf32>
    %12 = vector.shape_cast %11 : vector<8xf32> to vector<8x1xf32>
    %cst_8 = arith.constant 3.200000e+01 : f32
    %13 = vector.broadcast %cst_8 : f32 to vector<8x1xf32>
    %14 = arith.divf %12, %13 : vector<8x1xf32>
    %15 = vector.broadcast %7 : vector<8x1xf32> to vector<8x32xf32>
    %16 = arith.subf %1, %15 : vector<8x32xf32>
    %cst_9 = arith.constant 9.99999974E-6 : f32
    %17 = vector.broadcast %cst_9 : f32 to vector<8x1xf32>
    %18 = arith.addf %14, %17 : vector<8x1xf32>
    %19 = math.rsqrt %18 : vector<8x1xf32>
    %20 = vector.broadcast %19 : vector<8x1xf32> to vector<8x32xf32>
    %21 = arith.mulf %16, %20 : vector<8x32xf32>
    %22 = vector.broadcast %2 : vector<1x32xf32> to vector<8x32xf32>
    %23 = arith.mulf %21, %22 : vector<8x32xf32>
    %24 = vector.broadcast %3 : vector<1x32xf32> to vector<8x32xf32>
    %25 = arith.addf %23, %24 : vector<8x32xf32>
    %26 = arith.truncf %25 : vector<8x32xf32> to vector<8x32xbf16>
    %c0_10 = arith.constant 0 : index
    %c0_11 = arith.constant 0 : index
    %27 = vector.load %arg5[%c0_10, %c0_11] : memref<32x96xbf16, #tpu.memory_space<vmem>>, vector<32x96xbf16>
    %cst_12 = arith.constant dense<0.000000e+00> : vector<8x96xf32>
    %28 = tpu.matmul %26, %27, %cst_12 {dimension_numbers = #tpu.dot_dimension_numbers<[1], [0], [0], [1], [0, 0, 1, 1], [], []>} : vector<8x32xbf16>, vector<32x96xbf16>, vector<8x96xf32> -> vector<8x96xf32>
    %c0_13 = arith.constant 0 : index
    %c0_14 = arith.constant 0 : index
    %29 = vector.load %arg6[%c0_13, %c0_14] : memref<1x96xf32, #tpu.memory_space<vmem>>, vector<1x96xf32>
    %30 = vector.broadcast %29 : vector<1x96xf32> to vector<8x96xf32>
    %31 = arith.addf %28, %30 : vector<8x96xf32>
    %32 = vector.extract_strided_slice %31 {offsets = [0, 0], sizes = [8, 32], strides = [1, 1]} : vector<8x96xf32> to vector<8x32xf32>
    %cst_15 = arith.constant 0.353553385 : f32
    %33 = vector.broadcast %cst_15 : f32 to vector<8x32xf32>
    %34 = arith.mulf %32, %33 : vector<8x32xf32>
    %35 = arith.truncf %34 : vector<8x32xf32> to vector<8x32xbf16>
    %36 = vector.extract_strided_slice %31 {offsets = [0, 32], sizes = [8, 32], strides = [1, 1]} : vector<8x96xf32> to vector<8x32xf32>
    %37 = arith.truncf %36 : vector<8x32xf32> to vector<8x32xbf16>
    %38 = vector.extract_strided_slice %31 {offsets = [0, 64], sizes = [8, 32], strides = [1, 1]} : vector<8x96xf32> to vector<8x32xf32>
    %39 = arith.truncf %38 : vector<8x32xf32> to vector<8x32xbf16>
    %40 = vector.extract_strided_slice %35 {offsets = [0, 0], sizes = [8, 8], strides = [1, 1]} : vector<8x32xbf16> to vector<8x8xbf16>
    %c0_16 = arith.constant 0 : index
    %c0_17 = arith.constant 0 : index
    %c0_18 = arith.constant 0 : index
    %c0_19 = arith.constant 0 : index
    %41 = vector.load %arg7[%c0_16, %c0_17, %c0_18, %c0_19] : memref<1x4x8x8xbf16, #tpu.memory_space<vmem>>, vector<1x1x8x8xbf16>
    %42 = vector.shape_cast %41 : vector<1x1x8x8xbf16> to vector<8x8xbf16>
    %43 = vector.shape_cast %40 : vector<8x8xbf16> to vector<1x1x8x8xbf16>
    tpu.vector_store %arg7[%c0_16, %c0_17, %c0_18, %c0_19], %43 {strides = array<i32>} : memref<1x4x8x8xbf16, #tpu.memory_space<vmem>>, vector<1x1x8x8xbf16>,
    %44 = vector.extract_strided_slice %37 {offsets = [0, 0], sizes = [8, 8], strides = [1, 1]} : vector<8x32xbf16> to vector<8x8xbf16>
    %c0_20 = arith.constant 0 : index
    %c0_21 = arith.constant 0 : index
    %c0_22 = arith.constant 0 : index
    %c0_23 = arith.constant 0 : index
    %45 = vector.load %arg8[%c0_20, %c0_21, %c0_22, %c0_23] : memref<1x4x8x8xbf16, #tpu.memory_space<vmem>>, vector<1x1x8x8xbf16>
    %46 = vector.shape_cast %45 : vector<1x1x8x8xbf16> to vector<8x8xbf16>
    %47 = vector.shape_cast %44 : vector<8x8xbf16> to vector<1x1x8x8xbf16>
    tpu.vector_store %arg8[%c0_20, %c0_21, %c0_22, %c0_23], %47 {strides = array<i32>} : memref<1x4x8x8xbf16, #tpu.memory_space<vmem>>, vector<1x1x8x8xbf16>,
    %48 = vector.extract_strided_slice %39 {offsets = [0, 0], sizes = [8, 8], strides = [1, 1]} : vector<8x32xbf16> to vector<8x8xbf16>
    %c0_24 = arith.constant 0 : index
    %c0_25 = arith.constant 0 : index
    %c0_26 = arith.constant 0 : index
    %c0_27 = arith.constant 0 : index
    %49 = vector.load %arg9[%c0_24, %c0_25, %c0_26, %c0_27] : memref<1x4x8x8xbf16, #tpu.memory_space<vmem>>, vector<1x1x8x8xbf16>
    %50 = vector.shape_cast %49 : vector<1x1x8x8xbf16> to vector<8x8xbf16>
    %51 = vector.shape_cast %48 : vector<8x8xbf16> to vector<1x1x8x8xbf16>
    tpu.vector_store %arg9[%c0_24, %c0_25, %c0_26, %c0_27], %51 {strides = array<i32>} : memref<1x4x8x8xbf16, #tpu.memory_space<vmem>>, vector<1x1x8x8xbf16>,
    %52 = vector.extract_strided_slice %35 {offsets = [0, 8], sizes = [8, 8], strides = [1, 1]} : vector<8x32xbf16> to vector<8x8xbf16>
    %c0_28 = arith.constant 0 : index
    %c1 = arith.constant 1 : index
    %c0_29 = arith.constant 0 : index
    %c0_30 = arith.constant 0 : index
    %53 = vector.load %arg7[%c0_28, %c1, %c0_29, %c0_30] : memref<1x4x8x8xbf16, #tpu.memory_space<vmem>>, vector<1x1x8x8xbf16>
    %54 = vector.shape_cast %53 : vector<1x1x8x8xbf16> to vector<8x8xbf16>
    %55 = vector.shape_cast %52 : vector<8x8xbf16> to vector<1x1x8x8xbf16>
    tpu.vector_store %arg7[%c0_28, %c1, %c0_29, %c0_30], %55 {strides = array<i32>} : memref<1x4x8x8xbf16, #tpu.memory_space<vmem>>, vector<1x1x8x8xbf16>,
    %56 = vector.extract_strided_slice %37 {offsets = [0, 8], sizes = [8, 8], strides = [1, 1]} : vector<8x32xbf16> to vector<8x8xbf16>
    %c0_31 = arith.constant 0 : index
    %c1_32 = arith.constant 1 : index
    %c0_33 = arith.constant 0 : index
    %c0_34 = arith.constant 0 : index
    %57 = vector.load %arg8[%c0_31, %c1_32, %c0_33, %c0_34] : memref<1x4x8x8xbf16, #tpu.memory_space<vmem>>, vector<1x1x8x8xbf16>
    %58 = vector.shape_cast %57 : vector<1x1x8x8xbf16> to vector<8x8xbf16>
    %59 = vector.shape_cast %56 : vector<8x8xbf16> to vector<1x1x8x8xbf16>
    tpu.vector_store %arg8[%c0_31, %c1_32, %c0_33, %c0_34], %59 {strides = array<i32>} : memref<1x4x8x8xbf16, #tpu.memory_space<vmem>>, vector<1x1x8x8xbf16>,
    %60 = vector.extract_strided_slice %39 {offsets = [0, 8], sizes = [8, 8], strides = [1, 1]} : vector<8x32xbf16> to vector<8x8xbf16>
    %c0_35 = arith.constant 0 : index
    %c1_36 = arith.constant 1 : index
    %c0_37 = arith.constant 0 : index
    %c0_38 = arith.constant 0 : index
    %61 = vector.load %arg9[%c0_35, %c1_36, %c0_37, %c0_38] : memref<1x4x8x8xbf16, #tpu.memory_space<vmem>>, vector<1x1x8x8xbf16>
    %62 = vector.shape_cast %61 : vector<1x1x8x8xbf16> to vector<8x8xbf16>
    %63 = vector.shape_cast %60 : vector<8x8xbf16> to vector<1x1x8x8xbf16>
    tpu.vector_store %arg9[%c0_35, %c1_36, %c0_37, %c0_38], %63 {strides = array<i32>} : memref<1x4x8x8xbf16, #tpu.memory_space<vmem>>, vector<1x1x8x8xbf16>,
    %64 = vector.extract_strided_slice %35 {offsets = [0, 16], sizes = [8, 8], strides = [1, 1]} : vector<8x32xbf16> to vector<8x8xbf16>
    %c0_39 = arith.constant 0 : index
    %c2 = arith.constant 2 : index
    %c0_40 = arith.constant 0 : index
    %c0_41 = arith.constant 0 : index
    %65 = vector.load %arg7[%c0_39, %c2, %c0_40, %c0_41] : memref<1x4x8x8xbf16, #tpu.memory_space<vmem>>, vector<1x1x8x8xbf16>
    %66 = vector.shape_cast %65 : vector<1x1x8x8xbf16> to vector<8x8xbf16>
    %67 = vector.shape_cast %64 : vector<8x8xbf16> to vector<1x1x8x8xbf16>
    tpu.vector_store %arg7[%c0_39, %c2, %c0_40, %c0_41], %67 {strides = array<i32>} : memref<1x4x8x8xbf16, #tpu.memory_space<vmem>>, vector<1x1x8x8xbf16>,
    %68 = vector.extract_strided_slice %37 {offsets = [0, 16], sizes = [8, 8], strides = [1, 1]} : vector<8x32xbf16> to vector<8x8xbf16>
    %c0_42 = arith.constant 0 : index
    %c2_43 = arith.constant 2 : index
    %c0_44 = arith.constant 0 : index
    %c0_45 = arith.constant 0 : index
    %69 = vector.load %arg8[%c0_42, %c2_43, %c0_44, %c0_45] : memref<1x4x8x8xbf16, #tpu.memory_space<vmem>>, vector<1x1x8x8xbf16>
    %70 = vector.shape_cast %69 : vector<1x1x8x8xbf16> to vector<8x8xbf16>
    %71 = vector.shape_cast %68 : vector<8x8xbf16> to vector<1x1x8x8xbf16>
    tpu.vector_store %arg8[%c0_42, %c2_43, %c0_44, %c0_45], %71 {strides = array<i32>} : memref<1x4x8x8xbf16, #tpu.memory_space<vmem>>, vector<1x1x8x8xbf16>,
    %72 = vector.extract_strided_slice %39 {offsets = [0, 16], sizes = [8, 8], strides = [1, 1]} : vector<8x32xbf16> to vector<8x8xbf16>
    %c0_46 = arith.constant 0 : index
    %c2_47 = arith.constant 2 : index
    %c0_48 = arith.constant 0 : index
    %c0_49 = arith.constant 0 : index
    %73 = vector.load %arg9[%c0_46, %c2_47, %c0_48, %c0_49] : memref<1x4x8x8xbf16, #tpu.memory_space<vmem>>, vector<1x1x8x8xbf16>
    %74 = vector.shape_cast %73 : vector<1x1x8x8xbf16> to vector<8x8xbf16>
    %75 = vector.shape_cast %72 : vector<8x8xbf16> to vector<1x1x8x8xbf16>
    tpu.vector_store %arg9[%c0_46, %c2_47, %c0_48, %c0_49], %75 {strides = array<i32>} : memref<1x4x8x8xbf16, #tpu.memory_space<vmem>>, vector<1x1x8x8xbf16>,
    %76 = vector.extract_strided_slice %35 {offsets = [0, 24], sizes = [8, 8], strides = [1, 1]} : vector<8x32xbf16> to vector<8x8xbf16>
    %c0_50 = arith.constant 0 : index
    %c3 = arith.constant 3 : index
    %c0_51 = arith.constant 0 : index
    %c0_52 = arith.constant 0 : index
    %77 = vector.load %arg7[%c0_50, %c3, %c0_51, %c0_52] : memref<1x4x8x8xbf16, #tpu.memory_space<vmem>>, vector<1x1x8x8xbf16>
    %78 = vector.shape_cast %77 : vector<1x1x8x8xbf16> to vector<8x8xbf16>
    %79 = vector.shape_cast %76 : vector<8x8xbf16> to vector<1x1x8x8xbf16>
    tpu.vector_store %arg7[%c0_50, %c3, %c0_51, %c0_52], %79 {strides = array<i32>} : memref<1x4x8x8xbf16, #tpu.memory_space<vmem>>, vector<1x1x8x8xbf16>,
    %80 = vector.extract_strided_slice %37 {offsets = [0, 24], sizes = [8, 8], strides = [1, 1]} : vector<8x32xbf16> to vector<8x8xbf16>
    %c0_53 = arith.constant 0 : index
    %c3_54 = arith.constant 3 : index
    %c0_55 = arith.constant 0 : index
    %c0_56 = arith.constant 0 : index
    %81 = vector.load %arg8[%c0_53, %c3_54, %c0_55, %c0_56] : memref<1x4x8x8xbf16, #tpu.memory_space<vmem>>, vector<1x1x8x8xbf16>
    %82 = vector.shape_cast %81 : vector<1x1x8x8xbf16> to vector<8x8xbf16>
    %83 = vector.shape_cast %80 : vector<8x8xbf16> to vector<1x1x8x8xbf16>
    tpu.vector_store %arg8[%c0_53, %c3_54, %c0_55, %c0_56], %83 {strides = array<i32>} : memref<1x4x8x8xbf16, #tpu.memory_space<vmem>>, vector<1x1x8x8xbf16>,
    %84 = vector.extract_strided_slice %39 {offsets = [0, 24], sizes = [8, 8], strides = [1, 1]} : vector<8x32xbf16> to vector<8x8xbf16>
    %c0_57 = arith.constant 0 : index
    %c3_58 = arith.constant 3 : index
    %c0_59 = arith.constant 0 : index
    %c0_60 = arith.constant 0 : index
    %85 = vector.load %arg9[%c0_57, %c3_58, %c0_59, %c0_60] : memref<1x4x8x8xbf16, #tpu.memory_space<vmem>>, vector<1x1x8x8xbf16>
    %86 = vector.shape_cast %85 : vector<1x1x8x8xbf16> to vector<8x8xbf16>
    %87 = vector.shape_cast %84 : vector<8x8xbf16> to vector<1x1x8x8xbf16>
    tpu.vector_store %arg9[%c0_57, %c3_58, %c0_59, %c0_60], %87 {strides = array<i32>} : memref<1x4x8x8xbf16, #tpu.memory_space<vmem>>, vector<1x1x8x8xbf16>,
    return
  }
  func.func @transform_0(%arg0: i32, %arg1: i32) -> (i32, i32, i32) {
    %c0_i32 = arith.constant 0 : i32
    %c0_i32_0 = arith.constant 0 : i32
    return %arg0, %arg1, %c0_i32 : i32, i32, i32
  }
  func.func @transform_1(%arg0: i32, %arg1: i32) -> (i32, i32) {
    %c0_i32 = arith.constant 0 : i32
    %c0_i32_0 = arith.constant 0 : i32
    %c0_i32_1 = arith.constant 0 : i32
    return %c0_i32, %c0_i32_0 : i32, i32
  }
  func.func @transform_2(%arg0: i32, %arg1: i32) -> (i32, i32) {
    %c0_i32 = arith.constant 0 : i32
    %c0_i32_0 = arith.constant 0 : i32
    %c0_i32_1 = arith.constant 0 : i32
    return %c0_i32, %c0_i32_0 : i32, i32
  }
  func.func @transform_3(%arg0: i32, %arg1: i32) -> (i32, i32) {
    %c0_i32 = arith.constant 0 : i32
    %c0_i32_0 = arith.constant 0 : i32
    %c0_i32_1 = arith.constant 0 : i32
    return %c0_i32, %c0_i32_0 : i32, i32
  }
  func.func @transform_4(%arg0: i32, %arg1: i32) -> (i32, i32) {
    %c0_i32 = arith.constant 0 : i32
    %c0_i32_0 = arith.constant 0 : i32
    %c0_i32_1 = arith.constant 0 : i32
    return %c0_i32, %c0_i32_0 : i32, i32
  }
  func.func @transform_5(%arg0: i32, %arg1: i32) -> (i32, i32, i32, i32) {
    %c0_i32 = arith.constant 0 : i32
    %c0_i32_0 = arith.constant 0 : i32
    %c0_i32_1 = arith.constant 0 : i32
    return %arg0, %c0_i32, %arg1, %c0_i32_0 : i32, i32, i32, i32
  }
  func.func @transform_6(%arg0: i32, %arg1: i32) -> (i32, i32, i32, i32) {
    %c0_i32 = arith.constant 0 : i32
    %c0_i32_0 = arith.constant 0 : i32
    %c0_i32_1 = arith.constant 0 : i32
    return %arg0, %c0_i32, %arg1, %c0_i32_0 : i32, i32, i32, i32
  }
  func.func @transform_7(%arg0: i32, %arg1: i32) -> (i32, i32, i32, i32) {
    %c0_i32 = arith.constant 0 : i32
    %c0_i32_0 = arith.constant 0 : i32
    %c0_i32_1 = arith.constant 0 : i32
    return %arg0, %c0_i32, %arg1, %c0_i32_0 : i32, i32, i32, i32
  }
}

</mosaic_0001>

<llo_original>
// kernel: tpu_custom_call.1
$region0: #{tpu_custom_call.1}
  #allocation0 [shape = 'u32[]', space=smem, size = 0x4, offset = 0x4, fixed_abs, tag = 'smem constant byte address 0x4 - core index']
  #allocation1 [shape = 'u32[144,128]{1,0:T(1,128)}', space=vmem, size = 0x12000, scoped, tag = 'internal scratch']
  %s0 = inlined_call_operand.hbm [shape: f32[2,8,32], index: 0, kind: input, shape index: {}]
  %s1 = inlined_call_operand.vmem [shape: f32[1,32], index: 1, kind: input, shape index: {}]
  %s2 = inlined_call_operand.vmem [shape: f32[1,32], index: 2, kind: input, shape index: {}]
  %s3 = inlined_call_operand.hbm [shape: bf16[32,96], index: 3, kind: input, shape index: {}]
  %s4 = inlined_call_operand.vmem [shape: f32[1,96], index: 4, kind: input, shape index: {}]
  %s5 = inlined_call_operand.hbm [shape: bf16[2,4,8,8], index: 5, kind: output, shape index: {0}]
  %s6 = inlined_call_operand.hbm [shape: bf16[2,4,8,8], index: 6, kind: output, shape index: {1}]
  %s7 = inlined_call_operand.hbm [shape: bf16[2,4,8,8], index: 7, kind: output, shape index: {2}]
  %8 = xla_tuple %s5, %s6, %s7
  %s9 = sld [smem:[#allocation0]]
  $region77: #{tpu_custom_call.1} parent=0
    _
  %s11 = ssub.s32 1, %s9
  %s12 = scalar_select 0, %s11, %s9
  $region1: #{tpu_custom_call.1} parent=0
    #allocation2 [shape = 'u8[8192]{0}', space=vmem, size = 0x2000, scoped, tag = 'input window, operand 0']
    #allocation3 [shape = 's32[2]{0}', space=sflag, size = 0x8, scoped, tag = 'scoped memory for tpu_custom_call.1']
    #allocation4 [shape = 's32[2]{0}', space=sflag, size = 0x8, scoped, tag = 'scoped memory for tpu_custom_call.1']
    #allocation5 [shape = 'u8[8192]{0}', space=vmem, size = 0x2000, scoped, tag = 'input window, operand 3, single buffered']
    #allocation6 [shape = 's32[1]{0}', space=sflag, size = 0x4, scoped, tag = 'scoped memory for tpu_custom_call.1']
    #allocation7 [shape = 'u8[16384]{0}', space=vmem, size = 0x4000, scoped, tag = 'output window, operand 0']
    #allocation8 [shape = 'u8[16384]{0}', space=vmem, size = 0x4000, scoped, tag = 'output window, operand 1']
    #allocation9 [shape = 's32[2]{0}', space=sflag, size = 0x8, scoped, tag = 'scoped memory for tpu_custom_call.1']
    #allocation10 [shape = 'u8[16384]{0}', space=vmem, size = 0x4000, scoped, tag = 'output window, operand 2']
    %13 = vsyncpa [#allocation3], 0
    %s14 = scalar_lea.sflag [#allocation3], 1
    %15 = vsyncpa %s14, 0
    %16 = vsyncpa [#allocation6], 0
    %17 = vsyncpa [#allocation4], 0
    %s18 = scalar_lea.sflag [#allocation4], 1
    %19 = vsyncpa %s18, 0
    %20 = vsyncpa [#allocation9], 0
    %s21 = scalar_lea.sflag [#allocation9], 1
    %22 = vsyncpa %s21, 0
    loop: start=0, step=1, limit=4
    $region2: #{tpu_custom_call.1} parent=1 // loop_pre_header
      _
    $region3: #{tpu_custom_call.1} parent=1 // loop_header
      %s24 = sphi 0, %s28
      %p25 = scmp.ge.s32.totalorder %s24, 4
      %s31 = sphi 0, %s43
      %s32 = sphi 0, %s39
      %s33 = sphi 0, %s31
      %s34 = sphi 0, %s32
      %s35 = sphi 0, %s33
      %s36 = sphi 0, %s34
      %s48 = sphi 0, %s50
      %s51 = sphi 0, %s48
      %s52 = sphi 0, %s51
      %s68 = sphi 0, %s52
      %s72 = sphi 0, %s72
      %s74 = sphi 0, %s72
      %s75 = sphi 0, %s74
      %s89 = sphi 0, %s75
      %s93 = sphi 0, %s93
      %s95 = sphi 0, %s93
      %s96 = sphi 0, %s95
      %s110 = sphi 0, %s96
      %s114 = sphi 0, %s114
      %s116 = sphi 0, %s114
      %s117 = sphi 0, %s116
      %s131 = sphi 0, %s117
      %s135 = sphi 0, %s135
      %s137 = sphi 0, %s135
      %s138 = sphi 0, %s137
      %s152 = sphi 0, %s138
      %s160 = sphi 0, %s162
      %s163 = sphi 0, %s160
      %s164 = sphi 0, %s163
      %s180 = sphi 0, %s164
      %s188 = sphi 0, %s190
      %s191 = sphi 0, %s188
      %s192 = sphi 0, %s191
      %s208 = sphi 0, %s192
      %s216 = sphi 0, %s218
      %s219 = sphi 0, %s216
      %s220 = sphi 0, %s219
      %s236 = sphi 0, %s220
    $region4: #{tpu_custom_call.1} parent=1 // loop_header_branch
      %27 = sbr.rel (%p25) target = $region8
    $region5: #{tpu_custom_call.1} parent=1 // loop_body
      %s29 = ssub.s32 %s24, 1
      %s30 = ssub.s32 %s24, 2
      %s37 = sadd.s32 1, %s32
      %p38 = scmp.ge.s32.totalorder %s37, 1
      %s39 = scalar_select %p38, 0, %s37
      %s40 = sadd.s32 1, %s31
      %s41 = scalar_select %p38, %s40, %s31
      %p42 = scmp.ge.s32.totalorder %s41, 2
      %s43 = scalar_select %p42, 0, %s41
      %s44 = ssub.s32 %s31, %s43
      %s45 = ssub.s32 %s32, %s39
      %s46 = sor.u32 %s44, %s45
      %p47 = scmp.eq.s32.totalorder %s46, 0
      %s49 = sadd.s32 %s48, 1
      %s50 = scalar_select %p47, %s48, %s49
      %p53 = pneg %p47
      %p54 = scmp.eq.s32.totalorder %s24, 1
      %p55 = por %p53, %p54
      %p56 = scmp.ne.s32.totalorder %s48, %s51
      %p57 = scmp.eq.s32.totalorder %s24, 0
      %p58 = por %p56, %p57
      %p59 = scmp.ne.s32.totalorder %s48, %s51
      %p60 = scmp.eq.s32.totalorder %s29, 1
      %p61 = por %p59, %p60
      %p62 = scmp.ne.s32.totalorder %s51, %s52
      %p63 = scmp.eq.s32.totalorder %s29, 0
      %p64 = por %p62, %p63
      %p65 = scmp.ne.s32.totalorder %s51, %s52
      %p66 = scmp.eq.s32.totalorder %s30, 1
      %p67 = por %p65, %p66
      %p69 = scmp.ne.s32.totalorder %s52, %s68
      %p70 = scmp.eq.s32.totalorder %s30, 0
      %p71 = por %p69, %p70
      %s73 = sadd.s32 %s72, 1
      %p76 = scmp.eq.s32.totalorder %s24, 1
      %p77 = scmp.ne.s32.totalorder %s72, %s74
      %p78 = scmp.eq.s32.totalorder %s24, 0
      %p79 = por %p77, %p78
      %p80 = scmp.ne.s32.totalorder %s72, %s74
      %p81 = scmp.eq.s32.totalorder %s29, 1
      %p82 = por %p80, %p81
      %p83 = scmp.ne.s32.totalorder %s74, %s75
      %p84 = scmp.eq.s32.totalorder %s29, 0
      %p85 = por %p83, %p84
      %p86 = scmp.ne.s32.totalorder %s74, %s75
      %p87 = scmp.eq.s32.totalorder %s30, 1
      %p88 = por %p86, %p87
      %p90 = scmp.ne.s32.totalorder %s75, %s89
      %p91 = scmp.eq.s32.totalorder %s30, 0
      %p92 = por %p90, %p91
      %s94 = sadd.s32 %s93, 1
      %p97 = scmp.eq.s32.totalorder %s24, 1
      %p98 = scmp.ne.s32.totalorder %s93, %s95
      %p99 = scmp.eq.s32.totalorder %s24, 0
      %p100 = por %p98, %p99
      %p101 = scmp.ne.s32.totalorder %s93, %s95
      %p102 = scmp.eq.s32.totalorder %s29, 1
      %p103 = por %p101, %p102
      %p104 = scmp.ne.s32.totalorder %s95, %s96
      %p105 = scmp.eq.s32.totalorder %s29, 0
      %p106 = por %p104, %p105
      %p107 = scmp.ne.s32.totalorder %s95, %s96
      %p108 = scmp.eq.s32.totalorder %s30, 1
      %p109 = por %p107, %p108
      %p111 = scmp.ne.s32.totalorder %s96, %s110
      %p112 = scmp.eq.s32.totalorder %s30, 0
      %p113 = por %p111, %p112
      %s115 = sadd.s32 %s114, 1
      %p118 = scmp.eq.s32.totalorder %s24, 1
      %p119 = scmp.ne.s32.totalorder %s114, %s116
      %p120 = scmp.eq.s32.totalorder %s24, 0
      %p121 = por %p119, %p120
      %p122 = scmp.ne.s32.totalorder %s114, %s116
      %p123 = scmp.eq.s32.totalorder %s29, 1
      %p124 = por %p122, %p123
      %p125 = scmp.ne.s32.totalorder %s116, %s117
      %p126 = scmp.eq.s32.totalorder %s29, 0
      %p127 = por %p125, %p126
      %p128 = scmp.ne.s32.totalorder %s116, %s117
      %p129 = scmp.eq.s32.totalorder %s30, 1
      %p130 = por %p128, %p129
      %p132 = scmp.ne.s32.totalorder %s117, %s131
      %p133 = scmp.eq.s32.totalorder %s30, 0
      %p134 = por %p132, %p133
      %s136 = sadd.s32 %s135, 1
      %p139 = scmp.eq.s32.totalorder %s24, 1
      %p140 = scmp.ne.s32.totalorder %s135, %s137
      %p141 = scmp.eq.s32.totalorder %s24, 0
      %p142 = por %p140, %p141
      %p143 = scmp.ne.s32.totalorder %s135, %s137
      %p144 = scmp.eq.s32.totalorder %s29, 1
      %p145 = por %p143, %p144
      %p146 = scmp.ne.s32.totalorder %s137, %s138
      %p147 = scmp.eq.s32.totalorder %s29, 0
      %p148 = por %p146, %p147
      %p149 = scmp.ne.s32.totalorder %s137, %s138
      %p150 = scmp.eq.s32.totalorder %s30, 1
      %p151 = por %p149, %p150
      %p153 = scmp.ne.s32.totalorder %s138, %s152
      %p154 = scmp.eq.s32.totalorder %s30, 0
      %p155 = por %p153, %p154
      %s156 = ssub.s32 %s31, %s43
      %s157 = ssub.s32 %s32, %s39
      %s158 = sor.u32 %s156, %s157
      %p159 = scmp.eq.s32.totalorder %s158, 0
      %s161 = sadd.s32 %s160, 1
      %s162 = scalar_select %p159, %s160, %s161
      %p165 = pneg %p159
      %p166 = scmp.eq.s32.totalorder %s24, 1
      %p167 = por %p165, %p166
      %p168 = scmp.ne.s32.totalorder %s160, %s163
      %p169 = scmp.eq.s32.totalorder %s24, 0
      %p170 = por %p168, %p169
      %p171 = scmp.ne.s32.totalorder %s160, %s163
      %p172 = scmp.eq.s32.totalorder %s29, 1
      %p173 = por %p171, %p172
      %p174 = scmp.ne.s32.totalorder %s163, %s164
      %p175 = scmp.eq.s32.totalorder %s29, 0
      %p176 = por %p174, %p175
      %p177 = scmp.ne.s32.totalorder %s163, %s164
      %p178 = scmp.eq.s32.totalorder %s30, 1
      %p179 = por %p177, %p178
      %p181 = scmp.ne.s32.totalorder %s164, %s180
      %p182 = scmp.eq.s32.totalorder %s30, 0
      %p183 = por %p181, %p182
      %s184 = ssub.s32 %s31, %s43
      %s185 = ssub.s32 %s32, %s39
      %s186 = sor.u32 %s184, %s185
      %p187 = scmp.eq.s32.totalorder %s186, 0
      %s189 = sadd.s32 %s188, 1
      %s190 = scalar_select %p187, %s188, %s189
      %p193 = pneg %p187
      %p194 = scmp.eq.s32.totalorder %s24, 1
      %p195 = por %p193, %p194
      %p196 = scmp.ne.s32.totalorder %s188, %s191
      %p197 = scmp.eq.s32.totalorder %s24, 0
      %p198 = por %p196, %p197
      %p199 = scmp.ne.s32.totalorder %s188, %s191
      %p200 = scmp.eq.s32.totalorder %s29, 1
      %p201 = por %p199, %p200
      %p202 = scmp.ne.s32.totalorder %s191, %s192
      %p203 = scmp.eq.s32.totalorder %s29, 0
      %p204 = por %p202, %p203
      %p205 = scmp.ne.s32.totalorder %s191, %s192
      %p206 = scmp.eq.s32.totalorder %s30, 1
      %p207 = por %p205, %p206
      %p209 = scmp.ne.s32.totalorder %s192, %s208
      %p210 = scmp.eq.s32.totalorder %s30, 0
      %p211 = por %p209, %p210
      %s212 = ssub.s32 %s31, %s43
      %s213 = ssub.s32 %s32, %s39
      %s214 = sor.u32 %s212, %s213
      %p215 = scmp.eq.s32.totalorder %s214, 0
      %s217 = sadd.s32 %s216, 1
      %s218 = scalar_select %p215, %s216, %s217
      %p221 = pneg %p215
      %p222 = scmp.eq.s32.totalorder %s24, 1
      %p223 = por %p221, %p222
      %p224 = scmp.ne.s32.totalorder %s216, %s219
      %p225 = scmp.eq.s32.totalorder %s24, 0
      %p226 = por %p224, %p225
      %p227 = scmp.ne.s32.totalorder %s216, %s219
      %p228 = scmp.eq.s32.totalorder %s29, 1
      %p229 = por %p227, %p228
      %p230 = scmp.ne.s32.totalorder %s219, %s220
      %p231 = scmp.eq.s32.totalorder %s29, 0
      %p232 = por %p230, %p231
      %p233 = scmp.ne.s32.totalorder %s219, %s220
      %p234 = scmp.eq.s32.totalorder %s30, 1
      %p235 = por %p233, %p234
      %p237 = scmp.ne.s32.totalorder %s220, %s236
      %p238 = scmp.eq.s32.totalorder %s30, 0
      %p239 = por %p237, %p238
      %p240 = scmp.le.s32.totalorder 1, %s24
      %p241 = scmp.lt.s32.totalorder %s24, 3
      %p242 = pnand %p240, %p241
      %p243 = pneg %p242
      // Predicated region
      $region9: #{tpu_custom_call.1} parent=5 // pred_check
        _
      $region10: #{tpu_custom_call.1} parent=5 // pred_check_branch
        %245 = sbr.rel (%p242) target = $region12
      $region11: #{tpu_custom_call.1} parent=5 // pred_region
        %s246 = ssub.s32 %s24, 1
        // Predicated region
        $region13: #{tpu_custom_call.1} parent=11 // pred_check
          %p247 = pneg %p85
        $region14: #{tpu_custom_call.1} parent=11 // pred_check_branch
          %249 = sbr.rel (%p247) target = $region16
        $region15: #{tpu_custom_call.1} parent=11 // pred_region
          _
        $region16: #{tpu_custom_call.1} parent=11 // pred_fallthru
          _
        // Predicated region
        $region17: #{tpu_custom_call.1} parent=11 // pred_check
          %p250 = pneg %p106
        $region18: #{tpu_custom_call.1} parent=11 // pred_check_branch
          %252 = sbr.rel (%p250) target = $region20
        $region19: #{tpu_custom_call.1} parent=11 // pred_region
          _
        $region20: #{tpu_custom_call.1} parent=11 // pred_fallthru
          _
        // Predicated region
        $region21: #{tpu_custom_call.1} parent=11 // pred_check
          %p253 = pneg %p127
        $region22: #{tpu_custom_call.1} parent=11 // pred_check_branch
          %255 = sbr.rel (%p253) target = $region24
        $region23: #{tpu_custom_call.1} parent=11 // pred_region
          %s257 = ssub.s32 256, 256
          %258 = vsyncadd [#allocation6], %s257
          %s259 = sshll.u32 [#allocation5], 4
          %s260 = int_to_ptr.vmem [resolvable:$true] %s259
          %265 = dma.hbm_to_vmem [thread:$0]  %s3, 256, %s260, [#allocation6], 64, 64, 4
        $region24: #{tpu_custom_call.1} parent=11 // pred_fallthru
          _
        // Predicated region
        $region25: #{tpu_custom_call.1} parent=11 // pred_check
          %p266 = pneg %p148
        $region26: #{tpu_custom_call.1} parent=11 // pred_check_branch
          %268 = sbr.rel (%p266) target = $region28
        $region27: #{tpu_custom_call.1} parent=11 // pred_region
          _
        $region28: #{tpu_custom_call.1} parent=11 // pred_fallthru
          _
      $region12: #{tpu_custom_call.1} parent=5 // pred_fallthru
        _
      %p269 = scmp.lt.s32.totalorder %s24, 2
      // Predicated region
      $region29: #{tpu_custom_call.1} parent=5 // pred_check
        %p270 = pneg %p269
      $region30: #{tpu_custom_call.1} parent=5 // pred_check_branch
        %272 = sbr.rel (%p270) target = $region32
      $region31: #{tpu_custom_call.1} parent=5 // pred_region
        // Predicated region
        $region33: #{tpu_custom_call.1} parent=31 // pred_check
          %p273 = pneg %p58
        $region34: #{tpu_custom_call.1} parent=31 // pred_check_branch
          %275 = sbr.rel (%p273) target = $region36
        $region35: #{tpu_custom_call.1} parent=31 // pred_region
          %s276 = sand.u32 %s48, 1
          %s277 = scalar_lea.sflag [#allocation3], %s276
          %s278 = sand.u32 %s48, 1
          %s279 = smul.addr %s278, 8
          %s280 = scalar_lea.vmem [#allocation2], %s279
          %s282 = ssub.s32 128, 128
          %283 = vsyncadd %s277, %s282
          %s284 = sadd.s32 %s32, %s31
          %s285 = smul.addr %s284, 128
          %s286 = scalar_lea.hbm %s0, %s285
          %s288 = sshll.u32 %s280, 4
          %s289 = int_to_ptr.vmem [resolvable:$true] %s288
          %291 = dma.hbm_to_vmem [thread:$0]  %s286, 128, %s289, %s277
        $region36: #{tpu_custom_call.1} parent=31 // pred_fallthru
          _
      $region32: #{tpu_custom_call.1} parent=5 // pred_fallthru
        _
      %p292 = scmp.le.s32.totalorder 1, %s24
      %p293 = scmp.lt.s32.totalorder %s24, 3
      %p294 = pnand %p292, %p293
      %p295 = pneg %p294
      // Predicated region
      $region37: #{tpu_custom_call.1} parent=5 // pred_check
        _
      $region38: #{tpu_custom_call.1} parent=5 // pred_check_branch
        %297 = sbr.rel (%p294) target = $region40
      $region39: #{tpu_custom_call.1} parent=5 // pred_region
        %s298 = ssub.s32 %s24, 1
        %s299 = sand.u32 %s51, 1
        %s300 = scalar_lea.sflag [#allocation3], %s299
        %s301 = sand.u32 %s51, 1
        %s302 = smul.addr %s301, 8
        %s303 = scalar_lea.vmem [#allocation2], %s302
        // Predicated region
        $region41: #{tpu_custom_call.1} parent=39 // pred_check
          %p304 = pneg %p64
        $region42: #{tpu_custom_call.1} parent=39 // pred_check_branch
          %306 = sbr.rel (%p304) target = $region44
        $region43: #{tpu_custom_call.1} parent=39 // pred_region
          %307 = dma.done %s300, 128
        $region44: #{tpu_custom_call.1} parent=39 // pred_fallthru
          _
        // Predicated region
        $region45: #{tpu_custom_call.1} parent=39 // pred_check
          %p308 = pneg %p127
        $region46: #{tpu_custom_call.1} parent=39 // pred_check_branch
          %310 = sbr.rel (%p308) target = $region48
        $region47: #{tpu_custom_call.1} parent=39 // pred_region
          %311 = dma.done [#allocation6], 256
        $region48: #{tpu_custom_call.1} parent=39 // pred_fallthru
          _
        %s312 = sand.u32 %s51, 1
        %s313 = scalar_lea.sflag [#allocation3], %s312
        %s314 = sand.u32 %s51, 1
        %s315 = smul.addr %s314, 8
        %s316 = scalar_lea.vmem [#allocation2], %s315
        %p317 = pneg %p64
        %p318 = pneg %p61
        %p319 = pneg %p85
        %p320 = pneg %p82
        %p321 = pneg %p106
        %p322 = pneg %p103
        %p323 = pneg %p127
        %p324 = pneg %p124
        %p325 = pneg %p148
        %p326 = pneg %p145
        %p327 = pneg %p176
        %p328 = pneg %p173
        %s329 = sand.u32 %s163, 1
        %s330 = scalar_lea.sflag [#allocation4], %s329
        %s331 = sand.u32 %s163, 1
        %s332 = smul.addr %s331, 16
        %s333 = scalar_lea.vmem [#allocation7], %s332
        %p334 = pneg %p204
        %p335 = pneg %p201
        %s336 = sand.u32 %s29, 1
        %s337 = scalar_lea.sflag [#allocation9], %s336
        %s338 = sand.u32 %s191, 1
        %s339 = smul.addr %s338, 16
        %s340 = scalar_lea.vmem [#allocation8], %s339
        %p341 = pneg %p232
        %p342 = pneg %p229
        %s343 = sand.u32 %s29, 1
        %s344 = scalar_lea.sflag [#allocation9], %s343
        %s345 = sand.u32 %s219, 1
        %s346 = smul.addr %s345, 16
        %s347 = scalar_lea.vmem [#allocation10], %s346
        %v349 = vld [vmem:[%s303] sm:$0xff]
        %v350 = vld [vmem:[%s1] sm:$0x1]
        %v351 = vld [vmem:[%s2] sm:$0x1]
        %vm352 = vcmask 261120
        %v353 = vsel %vm352, %v349, 0.0
        %354 = vadd.xlane.f32.xlu0 %v353
        %v355 = vpop.xlane.xlu0 %354
        %v356 = vrcp.pop 32.0
        %v357 = vmul.f32 %v355, %v356
        %v358 = vsub.f32 %v349, %v357
        %v359 = vmul.f32 %v358, %v358
        %v360 = vsel %vm352, %v359, 0.0
        %361 = vadd.xlane.f32.xlu0 %v360
        %v362 = vpop.xlane.xlu0 %361
        %v363 = vmul.f32 %v362, %v356
        %v364 = vadd.f32 %v363, 1e-05
        %v365 = vrsqrt.pop %v364
        %v366 = vmul.f32 %v358, %v365
        %v368 = vlaneseq
        %v369 = vshrl.u32 %v368, 7
        %v370 = vsub.s32 0, %v369
        %v371 = vrot.slane %v350, %v370
        %v373 = vmul.f32 %v366, %v371
        %v375 = vlaneseq
        %v376 = vshrl.u32 %v375, 7
        %v377 = vsub.s32 0, %v376
        %v378 = vrot.slane %v351, %v377
        %v380 = vadd.f32 %v373, %v378
        %v381 = vpack.c.bf16 %v380, %v380
        %v382 = vld [vmem:[#allocation5] sm:$0xf]
        %v383 = vld [vmem:[#allocation5 + $0x4] sm:$0xf]
        %v384 = vld [vmem:[#allocation5 + $0x8] sm:$0xf]
        %v385 = vld [vmem:[#allocation5 + $0xc] sm:$0xf]
        %v386 = vld [vmem:[%s4] sm:$0x1]
        %v388 = vlaneseq
        %v389 = vshrl.u32 %v388, 7
        %v390 = vsub.s32 0, %v389
        %v391 = vrot.slane %v386, %v390
        %v397 = vunpack.c.l.b16 %v382
        %v398 = vunpack.c.l.b16 %v383
        %v399 = vunpack.c.l.b16 %v384
        %v400 = vunpack.c.l.b16 %v385
        %v401 = vpack.c.b16 %v398, %v397
        %v402 = vpack.c.b16 %v400, %v399
        %v406 = vsel %vm352, %v381, 0
        %408 = vmatprep.subr.bf16.mxu0 0
        %409 = vmatpush1.bf16.msra.mxu0 %v401
        %410 = vmatprep.subr.bf16.mxu0 0
        %411 = vmatpush1.bf16.msra.mxu0 %v402
        %412 = vmatprep.subr.bf16.mxu0 0
        %413 = vmatpush1.bf16.msra.mxu0 0
        %414 = vmatprep.subr.bf16.mxu0 0
        %415 = vmatpush1.bf16.msra.mxu0 0
        %416 = vmatprep.subr.bf16.mxu0 0
        %417 = vmatpush1.bf16.msra.mxu0 0
        %418 = vmatprep.subr.bf16.mxu0 0
        %419 = vmatpush1.bf16.msra.mxu0 0
        %420 = vmatprep.subr.bf16.mxu0 0
        %421 = vmatpush1.bf16.msra.mxu0 0
        %422 = vmatprep.subr.bf16.mxu0 0
        %423 = vmatpush1.bf16.msra.mxu0 0
        %424 = vmatprep.subr.bf16.mxu0 0
        %425 = vmatpush1.bf16.msra.mxu0 0
        %426 = vmatprep.subr.bf16.mxu0 0
        %427 = vmatpush1.bf16.msra.mxu0 0
        %428 = vmatprep.subr.bf16.mxu0 0
        %429 = vmatpush1.bf16.msra.mxu0 0
        %430 = vmatprep.subr.bf16.mxu0 0
        %431 = vmatpush1.bf16.msra.mxu0 0
        %432 = vmatprep.subr.bf16.mxu0 0
        %433 = vmatpush1.bf16.msra.mxu0 0
        %434 = vmatprep.subr.bf16.mxu0 0
        %435 = vmatpush1.bf16.msra.mxu0 0
        %436 = vmatprep.subr.bf16.mxu0 0
        %437 = vmatpush1.bf16.msra.mxu0 0
        %438 = vmatprep.subr.bf16.mxu0 0
        %439 = vmatpush1.bf16.msra.mxu0 0
        %440 = vmatprep.mubr.bf16.mxu0 0
        %441 = vmatmul.mubr.bf16.gmra.mrb[0].mxu0 %v406
        %v442 = vpop.f32.mrb[0].mxu0
        %v443 = vadd.f32 %v391, %v442
        %v444 = vpop.f32.mrb[0].mxu0
        %v445 = vpop.f32.mrb[0].mxu0
        %v446 = vpop.f32.mrb[0].mxu0
        %447 = vdwg.mxu0
        %v448 = vmul.f32 %v443, 0.35355338
        %v449 = vpack.c.bf16 %v448, %v448
        %v450 = vpack.c.bf16 %v443, %v443
        %vm451 = vcmask 60416
        %452 = vst.msk [vmem:[%s333] sm:$0xf] %vm451, %v449
        %v454 = vunpack.c.l.b16 %v450
        %v455 = vpack.c.b16 %v454, %v454
        %456 = vrot.lane.b32.xlu0 %v455, 96
        %v457 = vpop.permute.xlu0 %456
        %459 = vst.msk [vmem:[%s340] sm:$0xf] %vm451, %v457
        %460 = vrot.lane.b32.xlu0 %v455, 64
        %v461 = vpop.permute.xlu0 %460
        %463 = vst.msk [vmem:[%s347] sm:$0xf] %vm451, %v461
        %v465 = vunpack.c.l.b16 %v449
        %v466 = vpack.c.b16 %v465, %v465
        %467 = vrot.lane.b32.xlu0 %v466, 120
        %v468 = vpop.permute.xlu0 %467
        %s470 = scalar_lea.vmem %s333, 4 [#allocation7]
        %471 = vst.msk [vmem:[%s470] sm:$0xf] %vm451, %v468
        %472 = vrot.lane.b32.xlu0 %v455, 88
        %v473 = vpop.permute.xlu0 %472
        %s475 = scalar_lea.vmem %s340, 4 [#allocation8]
        %476 = vst.msk [vmem:[%s475] sm:$0xf] %vm451, %v473
        %477 = vrot.lane.b32.xlu0 %v455, 56
        %v478 = vpop.permute.xlu0 %477
        %s480 = scalar_lea.vmem %s347, 4 [#allocation10]
        %481 = vst.msk [vmem:[%s480] sm:$0xf] %vm451, %v478
        %482 = vrot.lane.b32.xlu0 %v466, 112
        %v483 = vpop.permute.xlu0 %482
        %s485 = scalar_lea.vmem %s333, 8 [#allocation7]
        %486 = vst.msk [vmem:[%s485] sm:$0xf] %vm451, %v483
        %487 = vrot.lane.b32.xlu0 %v455, 80
        %v488 = vpop.permute.xlu0 %487
        %s490 = scalar_lea.vmem %s340, 8 [#allocation8]
        %491 = vst.msk [vmem:[%s490] sm:$0xf] %vm451, %v488
        %492 = vrot.lane.b32.xlu0 %v455, 48
        %v493 = vpop.permute.xlu0 %492
        %s495 = scalar_lea.vmem %s347, 8 [#allocation10]
        %496 = vst.msk [vmem:[%s495] sm:$0xf] %vm451, %v493
        %497 = vrot.lane.b32.xlu0 %v466, 104
        %v498 = vpop.permute.xlu0 %497
        %s500 = scalar_lea.vmem %s333, 12 [#allocation7]
        %501 = vst.msk [vmem:[%s500] sm:$0xf] %vm451, %v498
        %502 = vrot.lane.b32.xlu0 %v455, 72
        %v503 = vpop.permute.xlu0 %502
        %s505 = scalar_lea.vmem %s340, 12 [#allocation8]
        %506 = vst.msk [vmem:[%s505] sm:$0xf] %vm451, %v503
        %507 = vrot.lane.b32.xlu0 %v455, 40
        %v508 = vpop.permute.xlu0 %507
        %s510 = scalar_lea.vmem %s347, 12 [#allocation10]
        %511 = vst.msk [vmem:[%s510] sm:$0xf] %vm451, %v508
        %s512 = sand.u32 %s163, 1
        %s513 = scalar_lea.sflag [#allocation4], %s512
        %s514 = sand.u32 %s163, 1
        %s515 = smul.addr %s514, 16
        %s516 = scalar_lea.vmem [#allocation7], %s515
        %s517 = sand.u32 %s29, 1
        %s518 = scalar_lea.sflag [#allocation9], %s517
        %s519 = sand.u32 %s191, 1
        %s520 = smul.addr %s519, 16
        %s521 = scalar_lea.vmem [#allocation8], %s520
        %s522 = sand.u32 %s29, 1
        %s523 = scalar_lea.sflag [#allocation9], %s522
        %s524 = sand.u32 %s219, 1
        %s525 = smul.addr %s524, 16
        %s526 = scalar_lea.vmem [#allocation10], %s525
        // Predicated region
        $region49: #{tpu_custom_call.1} parent=39 // pred_check
          %p527 = pneg %p173
        $region50: #{tpu_custom_call.1} parent=39 // pred_check_branch
          %529 = sbr.rel (%p527) target = $region52
        $region51: #{tpu_custom_call.1} parent=39 // pred_region
          %s531 = ssub.s32 256, 256
          %532 = vsyncadd %s513, %s531
          %s533 = smul.addr %s33, 4
          %s534 = sadd.s32 %s34, %s533
          %s535 = smul.addr %s534, 64
          %s536 = scalar_lea.hbm %s5, %s535
          %s537 = sshll.u32 %s516, 4
          %s538 = int_to_ptr.vmem [resolvable:$true] %s537
          %543 = dma.vmem_to_hbm [thread:$0]  %s538, 256, %s536, %s513, 64, 64, 4
        $region52: #{tpu_custom_call.1} parent=39 // pred_fallthru
          _
        // Predicated region
        $region53: #{tpu_custom_call.1} parent=39 // pred_check
          %p544 = pneg %p201
        $region54: #{tpu_custom_call.1} parent=39 // pred_check_branch
          %546 = sbr.rel (%p544) target = $region56
        $region55: #{tpu_custom_call.1} parent=39 // pred_region
          %s548 = ssub.s32 256, 256
          %549 = vsyncadd %s518, %s548
          %s550 = smul.addr %s33, 4
          %s551 = sadd.s32 %s34, %s550
          %s552 = smul.addr %s551, 64
          %s553 = scalar_lea.hbm %s6, %s552
          %s554 = sshll.u32 %s521, 4
          %s555 = int_to_ptr.vmem [resolvable:$true] %s554
          %560 = dma.vmem_to_hbm [thread:$0]  %s555, 256, %s553, %s518, 64, 64, 4
        $region56: #{tpu_custom_call.1} parent=39 // pred_fallthru
          _
        // Predicated region
        $region57: #{tpu_custom_call.1} parent=39 // pred_check
          %p561 = pneg %p229
        $region58: #{tpu_custom_call.1} parent=39 // pred_check_branch
          %563 = sbr.rel (%p561) target = $region60
        $region59: #{tpu_custom_call.1} parent=39 // pred_region
          %s565 = ssub.s32 256, 256
          %566 = vsyncadd %s523, %s565
          %s567 = smul.addr %s33, 4
          %s568 = sadd.s32 %s34, %s567
          %s569 = smul.addr %s568, 64
          %s570 = scalar_lea.hbm %s7, %s569
          %s571 = sshll.u32 %s526, 4
          %s572 = int_to_ptr.vmem [resolvable:$true] %s571
          %577 = dma.vmem_to_hbm [thread:$0]  %s572, 256, %s570, %s523, 64, 64, 4
        $region60: #{tpu_custom_call.1} parent=39 // pred_fallthru
          _
      $region40: #{tpu_custom_call.1} parent=5 // pred_fallthru
        _
      %p578 = scmp.le.s32.totalorder 2, %s24
      // Predicated region
      $region61: #{tpu_custom_call.1} parent=5 // pred_check
        %p579 = pneg %p578
      $region62: #{tpu_custom_call.1} parent=5 // pred_check_branch
        %581 = sbr.rel (%p579) target = $region64
      $region63: #{tpu_custom_call.1} parent=5 // pred_region
        %s582 = ssub.s32 %s24, 2
        // Predicated region
        $region65: #{tpu_custom_call.1} parent=63 // pred_check
          %p583 = pneg %p179
        $region66: #{tpu_custom_call.1} parent=63 // pred_check_branch
          %585 = sbr.rel (%p583) target = $region68
        $region67: #{tpu_custom_call.1} parent=63 // pred_region
          %s586 = sand.u32 %s164, 1
          %s587 = scalar_lea.sflag [#allocation4], %s586
          %s588 = sand.u32 %s164, 1
          %s589 = smul.addr %s588, 16
          %s590 = scalar_lea.vmem [#allocation7], %s589
          %591 = dma.done %s587, 256
        $region68: #{tpu_custom_call.1} parent=63 // pred_fallthru
          _
        // Predicated region
        $region69: #{tpu_custom_call.1} parent=63 // pred_check
          %p592 = pneg %p207
        $region70: #{tpu_custom_call.1} parent=63 // pred_check_branch
          %594 = sbr.rel (%p592) target = $region72
        $region71: #{tpu_custom_call.1} parent=63 // pred_region
          %s595 = sand.u32 %s30, 1
          %s596 = scalar_lea.sflag [#allocation9], %s595
          %s597 = sand.u32 %s192, 1
          %s598 = smul.addr %s597, 16
          %s599 = scalar_lea.vmem [#allocation8], %s598
          %600 = dma.done %s596, 256
        $region72: #{tpu_custom_call.1} parent=63 // pred_fallthru
          _
        // Predicated region
        $region73: #{tpu_custom_call.1} parent=63 // pred_check
          %p601 = pneg %p235
        $region74: #{tpu_custom_call.1} parent=63 // pred_check_branch
          %603 = sbr.rel (%p601) target = $region76
        $region75: #{tpu_custom_call.1} parent=63 // pred_region
          %s604 = sand.u32 %s30, 1
          %s605 = scalar_lea.sflag [#allocation9], %s604
          %s606 = sand.u32 %s220, 1
          %s607 = smul.addr %s606, 16
          %s608 = scalar_lea.vmem [#allocation10], %s607
          %609 = dma.done %s605, 256
        $region76: #{tpu_custom_call.1} parent=63 // pred_fallthru
          _
      $region64: #{tpu_custom_call.1} parent=5 // pred_fallthru
        _
    $region6: #{tpu_custom_call.1} parent=1 // loop_footer
      %s28 = sadd.s32 1, %s24
    $region7: #{tpu_custom_call.1} parent=1 // loop_footer_branch
      %23 = sbr.rel target = $region3
    $region8: #{tpu_custom_call.1} parent=1 // loop_exit
      _
    %610 = vsyncpa [#allocation3], 1
    %s611 = scalar_lea.sflag [#allocation3], 1
    %612 = vsyncpa %s611, 1
    %613 = vsyncpa [#allocation6], 1
    %614 = vsyncpa [#allocation4], 1
    %s615 = scalar_lea.sflag [#allocation4], 1
    %616 = vsyncpa %s615, 1
    %617 = vsyncpa [#allocation9], 1
    %s618 = scalar_lea.sflag [#allocation9], 1
    %619 = vsyncpa %s618, 1

</llo_original>
